<compile_context>
chip_gen: v7x
topology: tpu7x:2x2x1
jax: 0.10.0
libtpu: 0.0.40
codegen_flags: <defaults>
</compile_context>

<pallas_src>
import math
from collections import OrderedDict
from types import SimpleNamespace

import jax
import jax.numpy as jnp
from jax.experimental import pallas as pl
from jax.experimental.pallas import tpu as pltpu

_VMEM_BUDGET_BYTES = 8 * 1024 * 1024     # target for double-buffered in+out blocks
_MiB = 1024 * 1024


def _fused_copy_kernel(*refs):
    """Identity copy of one (1, c_blk, H_k, W_k) block per selected feature."""
    n = len(refs) // 2
    in_refs, out_refs = refs[:n], refs[n:]
    for x_ref, o_ref in zip(in_refs, out_refs):
        o_ref[...] = x_ref[...]


def _whole_array_copy_kernel(x_ref, o_ref):
    o_ref[...] = x_ref[...]


def _whole_array_copy(x):
    """Generic fallback: single-block identity copy of one array."""
    return pl.pallas_call(
        _whole_array_copy_kernel,
        out_shape=jax.ShapeDtypeStruct(x.shape, x.dtype),
    )(x)


def _fused_materialize(selected):
    """One pallas_call, N inputs / N outputs, per-array BlockSpecs.

    All features must be 4-D (N, C, H, W) with identical (N, C).  Each grid
    step copies a (1, c_blk, H_k, W_k) block of every feature: one HBM read
    and one HBM write per element, no relayout, no concat/pad/slice.
    """
    B = int(selected[0].shape[0])
    C = int(selected[0].shape[1])

    # Bytes per single (batch, channel) slice summed over all features.
    bytes_per_channel = sum(
        int(x.shape[2]) * int(x.shape[3]) * x.dtype.itemsize for x in selected
    )
    bytes_per_channel = max(bytes_per_channel, 1)

    # Channel-block size: largest divisor of C whose double-buffered in+out
    # blocks fit the VMEM budget (2 directions x 2 buffers = 4x).
    c_max = max(1, _VMEM_BUDGET_BYTES // (4 * bytes_per_channel))
    c_blk = max(d for d in range(1, C + 1) if C % d == 0 and d <= c_max)

    # Ensure >= 2 grid steps when possible so ("parallel", "parallel") can
    # actually shard across both TensorCores on v7x.
    if B * (C // c_blk) < 2 and c_blk > 1:
        proper = [d for d in range(1, c_blk) if C % d == 0]
        if proper:
            c_blk = max(proper)

    grid = (B, C // c_blk)
    idx_map = lambda b, c: (b, c, 0, 0)

    in_specs = [
        pl.BlockSpec((1, c_blk, int(x.shape[2]), int(x.shape[3])), idx_map)
        for x in selected
    ]
    out_specs = tuple(
        pl.BlockSpec((1, c_blk, int(x.shape[2]), int(x.shape[3])), idx_map)
        for x in selected
    )
    out_shape = tuple(jax.ShapeDtypeStruct(x.shape, x.dtype) for x in selected)

    total_bytes = sum(int(x.size) * x.dtype.itemsize for x in selected)
    # 2 directions (in + out) x 2 pipeline buffers, plus a little headroom.
    needed_vmem = 4 * c_blk * bytes_per_channel
    vmem_limit = int(max(8 * _MiB, needed_vmem + 2 * _MiB))

    out = pl.pallas_call(
        _fused_copy_kernel,
        out_shape=out_shape,
        grid=grid,
        in_specs=in_specs,
        out_specs=out_specs,
        compiler_params=pltpu.CompilerParams(
            dimension_semantics=("parallel", "parallel"),
            vmem_limit_bytes=vmem_limit,
        ),
        cost_estimate=pl.CostEstimate(
            flops=0, transcendentals=0, bytes_accessed=2 * total_bytes
        ),
    )(*selected)
    return list(out)


def materialize_selected(selected, small_bypass_bytes=0):
    """Materialize the selected feature maps through Pallas (identity copies)."""
    if not selected:
        return []

    total_bytes = sum(int(x.size) * x.dtype.itemsize for x in selected)
    if total_bytes < small_bypass_bytes:
        # Dispatch + pipeline-ramp overhead would dominate a tiny copy.
        return list(selected)

    fused_ok = (
        all(hasattr(x, "ndim") and x.ndim == 4 and x.size > 0 for x in selected)
        and len({(int(x.shape[0]), int(x.shape[1])) for x in selected}) == 1
    )
    if fused_ok:
        return _fused_materialize(selected)

    # Generic fallback (mismatched leading dims / non-4D): per-feature copy.
    return [x if int(x.size) == 0 else _whole_array_copy(x) for x in selected]


class FCOS:
    """JAX/Pallas port of the (trivial) FCOS feature-selection module.

    The PyTorch forward is pure dict selection, so by default the selected
    feature maps are returned directly (zero HBM traffic, zero kernels).
    `materialize_with_pallas=True` additionally realizes the selection through
    a single fused multi-input / multi-output Pallas identity kernel with
    exactly one HBM read and one HBM write per element.
    """

    def __init__(self, cfg, materialize_with_pallas=False,
                 small_bypass_bytes=128 * 1024):
        self.in_features = cfg.MODEL.FCOS.IN_FEATURES
        self.materialize_with_pallas = materialize_with_pallas
        self.small_bypass_bytes = small_bypass_bytes

    def __call__(self, features):
        selected = [features[f] for f in self.in_features]
        if not self.materialize_with_pallas:
            return selected  # exact PyTorch semantics: no copy at all
        return materialize_selected(selected, self.small_bypass_bytes)


def _make_cfg():
    return SimpleNamespace(
        MODEL=SimpleNamespace(
            FCOS=SimpleNamespace(IN_FEATURES=["p3", "p4", "p5"])
        )
    )


if __name__ == "__main__":
    key = jax.random.PRNGKey(0)
    k3, k4, k5, k6 = jax.random.split(key, 4)

    # Small FPN-like multi-level feature dict, NCHW, batch=2, channels=4.
    features = OrderedDict(
        p3=jax.random.normal(k3, (2, 4, 16, 16), dtype=jnp.float32),
        p4=jax.random.normal(k4, (2, 4, 8, 8), dtype=jnp.float32),
        p5=jax.random.normal(k5, (2, 4, 4, 4), dtype=jnp.float32),
        p6=jax.random.normal(k6, (2, 4, 2, 2), dtype=jnp.float32),  # not selected
    )

    cfg = _make_cfg()

    # Default (optimized) path: pure selection, no copies, no kernel launches.
    model = FCOS(cfg)
    outs = model(features)
    assert len(outs) == len(cfg.MODEL.FCOS.IN_FEATURES)
    for name, o in zip(cfg.MODEL.FCOS.IN_FEATURES, outs):
        assert o is features[name]

    # Pallas-materialized path: one fused N-in / N-out identity kernel.
    # small_bypass_bytes=0 so the (tiny) demo features still exercise the kernel.
    model_pallas = FCOS(cfg, materialize_with_pallas=True, small_bypass_bytes=0)
    outs_p = model_pallas(features)
    outs_p = [jax.block_until_ready(o) for o in outs_p]
    for name, o in zip(cfg.MODEL.FCOS.IN_FEATURES, outs_p):
        ref = features[name]
        assert o.shape == ref.shape and o.dtype == ref.dtype
        assert jnp.array_equal(o, ref)

    print("KERNEL_OK")
</pallas_src>

<mosaic_0001>
module attributes {stable_mosaic.version = 11 : i64} {
  func.func @_fused_copy_kernel(%arg0: i32, %arg1: i32, %arg2: memref<1x4x16x16xf32, #tpu.memory_space<vmem>>, %arg3: memref<1x4x8x8xf32, #tpu.memory_space<vmem>>, %arg4: memref<1x4x4x4xf32, #tpu.memory_space<vmem>>, %arg5: memref<1x4x16x16xf32, #tpu.memory_space<vmem>>, %arg6: memref<1x4x8x8xf32, #tpu.memory_space<vmem>>, %arg7: memref<1x4x4x4xf32, #tpu.memory_space<vmem>>) attributes {dimension_semantics = [#tpu.dimension_semantics<parallel>, #tpu.dimension_semantics<parallel>], iteration_bounds = array<i64: 2, 1>, scalar_prefetch = 0 : i64, scratch_operands = 0 : i64, tpu.core_type = #tpu.core_type<tc>, window_params = [{transform_indices = @transform_0, window_bounds = array<i64: 1, 4, 16, 16>}, {transform_indices = @transform_1, window_bounds = array<i64: 1, 4, 8, 8>}, {transform_indices = @transform_2, window_bounds = array<i64: 1, 4, 4, 4>}, {transform_indices = @transform_3, window_bounds = array<i64: 1, 4, 16, 16>}, {transform_indices = @transform_4, window_bounds = array<i64: 1, 4, 8, 8>}, {transform_indices = @transform_5, window_bounds = array<i64: 1, 4, 4, 4>}]} {
    %c0 = arith.constant 0 : index
    %c0_0 = arith.constant 0 : index
    %c0_1 = arith.constant 0 : index
    %c0_2 = arith.constant 0 : index
    %0 = vector.load %arg2[%c0, %c0_0, %c0_1, %c0_2] : memref<1x4x16x16xf32, #tpu.memory_space<vmem>>, vector<1x4x16x16xf32>
    %c0_3 = arith.constant 0 : index
    %c0_4 = arith.constant 0 : index
    %c0_5 = arith.constant 0 : index
    %c0_6 = arith.constant 0 : index
    %1 = vector.load %arg5[%c0_3, %c0_4, %c0_5, %c0_6] : memref<1x4x16x16xf32, #tpu.memory_space<vmem>>, vector<1x4x16x16xf32>
    tpu.vector_store %arg5[%c0_3, %c0_4, %c0_5, %c0_6], %0 {strides = array<i32>} : memref<1x4x16x16xf32, #tpu.memory_space<vmem>>, vector<1x4x16x16xf32>,
    %c0_7 = arith.constant 0 : index
    %c0_8 = arith.constant 0 : index
    %c0_9 = arith.constant 0 : index
    %c0_10 = arith.constant 0 : index
    %2 = vector.load %arg3[%c0_7, %c0_8, %c0_9, %c0_10] : memref<1x4x8x8xf32, #tpu.memory_space<vmem>>, vector<1x4x8x8xf32>
    %c0_11 = arith.constant 0 : index
    %c0_12 = arith.constant 0 : index
    %c0_13 = arith.constant 0 : index
    %c0_14 = arith.constant 0 : index
    %3 = vector.load %arg6[%c0_11, %c0_12, %c0_13, %c0_14] : memref<1x4x8x8xf32, #tpu.memory_space<vmem>>, vector<1x4x8x8xf32>
    tpu.vector_store %arg6[%c0_11, %c0_12, %c0_13, %c0_14], %2 {strides = array<i32>} : memref<1x4x8x8xf32, #tpu.memory_space<vmem>>, vector<1x4x8x8xf32>,
    %c0_15 = arith.constant 0 : index
    %c0_16 = arith.constant 0 : index
    %c0_17 = arith.constant 0 : index
    %c0_18 = arith.constant 0 : index
    %4 = vector.load %arg4[%c0_15, %c0_16, %c0_17, %c0_18] : memref<1x4x4x4xf32, #tpu.memory_space<vmem>>, vector<1x4x4x4xf32>
    %c0_19 = arith.constant 0 : index
    %c0_20 = arith.constant 0 : index
    %c0_21 = arith.constant 0 : index
    %c0_22 = arith.constant 0 : index
    %5 = vector.load %arg7[%c0_19, %c0_20, %c0_21, %c0_22] : memref<1x4x4x4xf32, #tpu.memory_space<vmem>>, vector<1x4x4x4xf32>
    tpu.vector_store %arg7[%c0_19, %c0_20, %c0_21, %c0_22], %4 {strides = array<i32>} : memref<1x4x4x4xf32, #tpu.memory_space<vmem>>, vector<1x4x4x4xf32>,
    return
  }
  func.func @transform_0(%arg0: i32, %arg1: i32) -> (i32, i32, i32, i32) {
    %c0_i32 = arith.constant 0 : i32
    %c0_i32_0 = arith.constant 0 : i32
    %c0_i32_1 = arith.constant 0 : i32
    return %arg0, %arg1, %c0_i32, %c0_i32_0 : i32, i32, i32, i32
  }
  func.func @transform_1(%arg0: i32, %arg1: i32) -> (i32, i32, i32, i32) {
    %c0_i32 = arith.constant 0 : i32
    %c0_i32_0 = arith.constant 0 : i32
    %c0_i32_1 = arith.constant 0 : i32
    return %arg0, %arg1, %c0_i32, %c0_i32_0 : i32, i32, i32, i32
  }
  func.func @transform_2(%arg0: i32, %arg1: i32) -> (i32, i32, i32, i32) {
    %c0_i32 = arith.constant 0 : i32
    %c0_i32_0 = arith.constant 0 : i32
    %c0_i32_1 = arith.constant 0 : i32
    return %arg0, %arg1, %c0_i32, %c0_i32_0 : i32, i32, i32, i32
  }
  func.func @transform_3(%arg0: i32, %arg1: i32) -> (i32, i32, i32, i32) {
    %c0_i32 = arith.constant 0 : i32
    %c0_i32_0 = arith.constant 0 : i32
    %c0_i32_1 = arith.constant 0 : i32
    return %arg0, %arg1, %c0_i32, %c0_i32_0 : i32, i32, i32, i32
  }
  func.func @transform_4(%arg0: i32, %arg1: i32) -> (i32, i32, i32, i32) {
    %c0_i32 = arith.constant 0 : i32
    %c0_i32_0 = arith.constant 0 : i32
    %c0_i32_1 = arith.constant 0 : i32
    return %arg0, %arg1, %c0_i32, %c0_i32_0 : i32, i32, i32, i32
  }
  func.func @transform_5(%arg0: i32, %arg1: i32) -> (i32, i32, i32, i32) {
    %c0_i32 = arith.constant 0 : i32
    %c0_i32_0 = arith.constant 0 : i32
    %c0_i32_1 = arith.constant 0 : i32
    return %arg0, %arg1, %c0_i32, %c0_i32_0 : i32, i32, i32, i32
  }
}

</mosaic_0001>

<llo_original>
// kernel: tpu_custom_call.1
$region0: #{tpu_custom_call.1}
  #allocation0 [shape = 'u32[]', space=smem, size = 0x4, offset = 0x4, fixed_abs, tag = 'smem constant byte address 0x4 - core index']
  #allocation1 [shape = 'u32[144,128]{1,0:T(1,128)}', space=vmem, size = 0x12000, scoped, tag = 'internal scratch']
  %s0 = inlined_call_operand.hbm [shape: f32[2,4,16,16], index: 0, kind: input, shape index: {}]
  %s1 = inlined_call_operand.hbm [shape: f32[2,4,8,8], index: 1, kind: input, shape index: {}]
  %s2 = inlined_call_operand.hbm [shape: f32[2,4,4,4], index: 2, kind: input, shape index: {}]
  %s3 = inlined_call_operand.hbm [shape: f32[2,4,16,16], index: 3, kind: output, shape index: {0}]
  %s4 = inlined_call_operand.hbm [shape: f32[2,4,8,8], index: 4, kind: output, shape index: {1}]
  %s5 = inlined_call_operand.hbm [shape: f32[2,4,4,4], index: 5, kind: output, shape index: {2}]
  %6 = xla_tuple %s3, %s4, %s5
  %s7 = sld [smem:[#allocation0]]
  $region73: #{tpu_custom_call.1} parent=0
    _
  %s9 = ssub.s32 1, %s7
  %s10 = scalar_select 0, %s9, %s7
  $region1: #{tpu_custom_call.1} parent=0
    #allocation2 [shape = 'u8[65536]{0}', space=vmem, size = 0x10000, scoped, tag = 'input window, operand 0']
    #allocation3 [shape = 's32[2]{0}', space=sflag, size = 0x8, scoped, tag = 'scoped memory for tpu_custom_call.1']
    #allocation4 [shape = 's32[2]{0}', space=sflag, size = 0x8, scoped, tag = 'scoped memory for tpu_custom_call.1']
    #allocation5 [shape = 'u8[32768]{0}', space=vmem, size = 0x8000, scoped, tag = 'input window, operand 1']
    #allocation6 [shape = 's32[2]{0}', space=sflag, size = 0x8, scoped, tag = 'scoped memory for tpu_custom_call.1']
    #allocation7 [shape = 'u8[16384]{0}', space=vmem, size = 0x4000, scoped, tag = 'input window, operand 2']
    #allocation8 [shape = 'u8[65536]{0}', space=vmem, size = 0x10000, scoped, tag = 'output window, operand 0']
    #allocation9 [shape = 'u8[32768]{0}', space=vmem, size = 0x8000, scoped, tag = 'output window, operand 1']
    #allocation10 [shape = 's32[2]{0}', space=sflag, size = 0x8, scoped, tag = 'scoped memory for tpu_custom_call.1']
    #allocation11 [shape = 'u8[16384]{0}', space=vmem, size = 0x4000, scoped, tag = 'output window, operand 2']
    %11 = vsyncpa [#allocation3], 0
    %s12 = scalar_lea.sflag [#allocation3], 1
    %13 = vsyncpa %s12, 0
    %14 = vsyncpa [#allocation6], 0
    %s15 = scalar_lea.sflag [#allocation6], 1
    %16 = vsyncpa %s15, 0
    %17 = vsyncpa [#allocation4], 0
    %s18 = scalar_lea.sflag [#allocation4], 1
    %19 = vsyncpa %s18, 0
    %20 = vsyncpa [#allocation10], 0
    %s21 = scalar_lea.sflag [#allocation10], 1
    %22 = vsyncpa %s21, 0
    loop: start=0, step=1, limit=4
    $region2: #{tpu_custom_call.1} parent=1 // loop_pre_header
      _
    $region3: #{tpu_custom_call.1} parent=1 // loop_header
      %s24 = sphi 0, %s28
      %p25 = scmp.ge.s32.totalorder %s24, 4
      %s31 = sphi 0, %s43
      %s32 = sphi 0, %s39
      %s33 = sphi 0, %s31
      %s34 = sphi 0, %s32
      %s35 = sphi 0, %s33
      %s36 = sphi 0, %s34
      %s48 = sphi 0, %s50
      %s51 = sphi 0, %s48
      %s52 = sphi 0, %s51
      %s68 = sphi 0, %s52
      %s76 = sphi 0, %s78
      %s79 = sphi 0, %s76
      %s80 = sphi 0, %s79
      %s96 = sphi 0, %s80
      %s104 = sphi 0, %s106
      %s107 = sphi 0, %s104
      %s108 = sphi 0, %s107
      %s124 = sphi 0, %s108
      %s132 = sphi 0, %s134
      %s135 = sphi 0, %s132
      %s136 = sphi 0, %s135
      %s152 = sphi 0, %s136
      %s160 = sphi 0, %s162
      %s163 = sphi 0, %s160
      %s164 = sphi 0, %s163
      %s180 = sphi 0, %s164
      %s188 = sphi 0, %s190
      %s191 = sphi 0, %s188
      %s192 = sphi 0, %s191
      %s208 = sphi 0, %s192
    $region4: #{tpu_custom_call.1} parent=1 // loop_header_branch
      %27 = sbr.rel (%p25) target = $region8
    $region5: #{tpu_custom_call.1} parent=1 // loop_body
      %s29 = ssub.s32 %s24, 1
      %s30 = ssub.s32 %s24, 2
      %s37 = sadd.s32 1, %s32
      %p38 = scmp.ge.s32.totalorder %s37, 1
      %s39 = scalar_select %p38, 0, %s37
      %s40 = sadd.s32 1, %s31
      %s41 = scalar_select %p38, %s40, %s31
      %p42 = scmp.ge.s32.totalorder %s41, 2
      %s43 = scalar_select %p42, 0, %s41
      %s44 = ssub.s32 %s31, %s43
      %s45 = ssub.s32 %s32, %s39
      %s46 = sor.u32 %s44, %s45
      %p47 = scmp.eq.s32.totalorder %s46, 0
      %s49 = sadd.s32 %s48, 1
      %s50 = scalar_select %p47, %s48, %s49
      %p53 = pneg %p47
      %p54 = scmp.eq.s32.totalorder %s24, 1
      %p55 = por %p53, %p54
      %p56 = scmp.ne.s32.totalorder %s48, %s51
      %p57 = scmp.eq.s32.totalorder %s24, 0
      %p58 = por %p56, %p57
      %p59 = scmp.ne.s32.totalorder %s48, %s51
      %p60 = scmp.eq.s32.totalorder %s29, 1
      %p61 = por %p59, %p60
      %p62 = scmp.ne.s32.totalorder %s51, %s52
      %p63 = scmp.eq.s32.totalorder %s29, 0
      %p64 = por %p62, %p63
      %p65 = scmp.ne.s32.totalorder %s51, %s52
      %p66 = scmp.eq.s32.totalorder %s30, 1
      %p67 = por %p65, %p66
      %p69 = scmp.ne.s32.totalorder %s52, %s68
      %p70 = scmp.eq.s32.totalorder %s30, 0
      %p71 = por %p69, %p70
      %s72 = ssub.s32 %s31, %s43
      %s73 = ssub.s32 %s32, %s39
      %s74 = sor.u32 %s72, %s73
      %p75 = scmp.eq.s32.totalorder %s74, 0
      %s77 = sadd.s32 %s76, 1
      %s78 = scalar_select %p75, %s76, %s77
      %p81 = pneg %p75
      %p82 = scmp.eq.s32.totalorder %s24, 1
      %p83 = por %p81, %p82
      %p84 = scmp.ne.s32.totalorder %s76, %s79
      %p85 = scmp.eq.s32.totalorder %s24, 0
      %p86 = por %p84, %p85
      %p87 = scmp.ne.s32.totalorder %s76, %s79
      %p88 = scmp.eq.s32.totalorder %s29, 1
      %p89 = por %p87, %p88
      %p90 = scmp.ne.s32.totalorder %s79, %s80
      %p91 = scmp.eq.s32.totalorder %s29, 0
      %p92 = por %p90, %p91
      %p93 = scmp.ne.s32.totalorder %s79, %s80
      %p94 = scmp.eq.s32.totalorder %s30, 1
      %p95 = por %p93, %p94
      %p97 = scmp.ne.s32.totalorder %s80, %s96
      %p98 = scmp.eq.s32.totalorder %s30, 0
      %p99 = por %p97, %p98
      %s100 = ssub.s32 %s31, %s43
      %s101 = ssub.s32 %s32, %s39
      %s102 = sor.u32 %s100, %s101
      %p103 = scmp.eq.s32.totalorder %s102, 0
      %s105 = sadd.s32 %s104, 1
      %s106 = scalar_select %p103, %s104, %s105
      %p109 = pneg %p103
      %p110 = scmp.eq.s32.totalorder %s24, 1
      %p111 = por %p109, %p110
      %p112 = scmp.ne.s32.totalorder %s104, %s107
      %p113 = scmp.eq.s32.totalorder %s24, 0
      %p114 = por %p112, %p113
      %p115 = scmp.ne.s32.totalorder %s104, %s107
      %p116 = scmp.eq.s32.totalorder %s29, 1
      %p117 = por %p115, %p116
      %p118 = scmp.ne.s32.totalorder %s107, %s108
      %p119 = scmp.eq.s32.totalorder %s29, 0
      %p120 = por %p118, %p119
      %p121 = scmp.ne.s32.totalorder %s107, %s108
      %p122 = scmp.eq.s32.totalorder %s30, 1
      %p123 = por %p121, %p122
      %p125 = scmp.ne.s32.totalorder %s108, %s124
      %p126 = scmp.eq.s32.totalorder %s30, 0
      %p127 = por %p125, %p126
      %s128 = ssub.s32 %s31, %s43
      %s129 = ssub.s32 %s32, %s39
      %s130 = sor.u32 %s128, %s129
      %p131 = scmp.eq.s32.totalorder %s130, 0
      %s133 = sadd.s32 %s132, 1
      %s134 = scalar_select %p131, %s132, %s133
      %p137 = pneg %p131
      %p138 = scmp.eq.s32.totalorder %s24, 1
      %p139 = por %p137, %p138
      %p140 = scmp.ne.s32.totalorder %s132, %s135
      %p141 = scmp.eq.s32.totalorder %s24, 0
      %p142 = por %p140, %p141
      %p143 = scmp.ne.s32.totalorder %s132, %s135
      %p144 = scmp.eq.s32.totalorder %s29, 1
      %p145 = por %p143, %p144
      %p146 = scmp.ne.s32.totalorder %s135, %s136
      %p147 = scmp.eq.s32.totalorder %s29, 0
      %p148 = por %p146, %p147
      %p149 = scmp.ne.s32.totalorder %s135, %s136
      %p150 = scmp.eq.s32.totalorder %s30, 1
      %p151 = por %p149, %p150
      %p153 = scmp.ne.s32.totalorder %s136, %s152
      %p154 = scmp.eq.s32.totalorder %s30, 0
      %p155 = por %p153, %p154
      %s156 = ssub.s32 %s31, %s43
      %s157 = ssub.s32 %s32, %s39
      %s158 = sor.u32 %s156, %s157
      %p159 = scmp.eq.s32.totalorder %s158, 0
      %s161 = sadd.s32 %s160, 1
      %s162 = scalar_select %p159, %s160, %s161
      %p165 = pneg %p159
      %p166 = scmp.eq.s32.totalorder %s24, 1
      %p167 = por %p165, %p166
      %p168 = scmp.ne.s32.totalorder %s160, %s163
      %p169 = scmp.eq.s32.totalorder %s24, 0
      %p170 = por %p168, %p169
      %p171 = scmp.ne.s32.totalorder %s160, %s163
      %p172 = scmp.eq.s32.totalorder %s29, 1
      %p173 = por %p171, %p172
      %p174 = scmp.ne.s32.totalorder %s163, %s164
      %p175 = scmp.eq.s32.totalorder %s29, 0
      %p176 = por %p174, %p175
      %p177 = scmp.ne.s32.totalorder %s163, %s164
      %p178 = scmp.eq.s32.totalorder %s30, 1
      %p179 = por %p177, %p178
      %p181 = scmp.ne.s32.totalorder %s164, %s180
      %p182 = scmp.eq.s32.totalorder %s30, 0
      %p183 = por %p181, %p182
      %s184 = ssub.s32 %s31, %s43
      %s185 = ssub.s32 %s32, %s39
      %s186 = sor.u32 %s184, %s185
      %p187 = scmp.eq.s32.totalorder %s186, 0
      %s189 = sadd.s32 %s188, 1
      %s190 = scalar_select %p187, %s188, %s189
      %p193 = pneg %p187
      %p194 = scmp.eq.s32.totalorder %s24, 1
      %p195 = por %p193, %p194
      %p196 = scmp.ne.s32.totalorder %s188, %s191
      %p197 = scmp.eq.s32.totalorder %s24, 0
      %p198 = por %p196, %p197
      %p199 = scmp.ne.s32.totalorder %s188, %s191
      %p200 = scmp.eq.s32.totalorder %s29, 1
      %p201 = por %p199, %p200
      %p202 = scmp.ne.s32.totalorder %s191, %s192
      %p203 = scmp.eq.s32.totalorder %s29, 0
      %p204 = por %p202, %p203
      %p205 = scmp.ne.s32.totalorder %s191, %s192
      %p206 = scmp.eq.s32.totalorder %s30, 1
      %p207 = por %p205, %p206
      %p209 = scmp.ne.s32.totalorder %s192, %s208
      %p210 = scmp.eq.s32.totalorder %s30, 0
      %p211 = por %p209, %p210
      %p212 = scmp.le.s32.totalorder 1, %s24
      %p213 = scmp.lt.s32.totalorder %s24, 3
      %p214 = pnand %p212, %p213
      %p215 = pneg %p214
      // Predicated region
      $region9: #{tpu_custom_call.1} parent=5 // pred_check
        _
      $region10: #{tpu_custom_call.1} parent=5 // pred_check_branch
        %217 = sbr.rel (%p214) target = $region12
      $region11: #{tpu_custom_call.1} parent=5 // pred_region
        %s218 = ssub.s32 %s24, 1
      $region12: #{tpu_custom_call.1} parent=5 // pred_fallthru
        _
      %p219 = scmp.lt.s32.totalorder %s24, 2
      // Predicated region
      $region13: #{tpu_custom_call.1} parent=5 // pred_check
        %p220 = pneg %p219
      $region14: #{tpu_custom_call.1} parent=5 // pred_check_branch
        %222 = sbr.rel (%p220) target = $region16
      $region15: #{tpu_custom_call.1} parent=5 // pred_region
        // Predicated region
        $region17: #{tpu_custom_call.1} parent=15 // pred_check
          %p223 = pneg %p58
        $region18: #{tpu_custom_call.1} parent=15 // pred_check_branch
          %225 = sbr.rel (%p223) target = $region20
        $region19: #{tpu_custom_call.1} parent=15 // pred_region
          %s226 = sand.u32 %s48, 1
          %s227 = scalar_lea.sflag [#allocation3], %s226
          %s228 = sand.u32 %s48, 1
          %s229 = smul.addr %s228, 64
          %s230 = scalar_lea.vmem [#allocation2], %s229
          %s231 = smul.u32 4, %s32
          %s233 = ssub.s32 1024, 1024
          %234 = vsyncadd %s227, %s233
          %s235 = smul.addr %s231, 2
          %s236 = smul.addr %s31, 8
          %s237 = sadd.s32 %s235, %s236
          %s238 = smul.addr %s237, 128
          %s239 = scalar_lea.hbm %s0, %s238
          %s240 = sshll.u32 %s230, 4
          %s241 = int_to_ptr.vmem [resolvable:$true] %s240
          %246 = dma.hbm_to_vmem [thread:$0]  %s239, 1024, %s241, %s227, 128, 128, 8
        $region20: #{tpu_custom_call.1} parent=15 // pred_fallthru
          _
        // Predicated region
        $region21: #{tpu_custom_call.1} parent=15 // pred_check
          %p247 = pneg %p86
        $region22: #{tpu_custom_call.1} parent=15 // pred_check_branch
          %249 = sbr.rel (%p247) target = $region24
        $region23: #{tpu_custom_call.1} parent=15 // pred_region
          %s250 = sand.u32 %s24, 1
          %s251 = scalar_lea.sflag [#allocation6], %s250
          %s252 = sand.u32 %s76, 1
          %s253 = smul.addr %s252, 32
          %s254 = scalar_lea.vmem [#allocation5], %s253
          %s255 = smul.u32 4, %s32
          %s257 = ssub.s32 512, 512
          %258 = vsyncadd %s251, %s257
          %s259 = smul.addr %s31, 4
          %s260 = sadd.s32 %s255, %s259
          %s261 = smul.addr %s260, 128
          %s262 = scalar_lea.hbm %s1, %s261
          %s263 = sshll.u32 %s254, 4
          %s264 = int_to_ptr.vmem [resolvable:$true] %s263
          %269 = dma.hbm_to_vmem [thread:$0]  %s262, 512, %s264, %s251, 128, 128, 8
        $region24: #{tpu_custom_call.1} parent=15 // pred_fallthru
          _
        // Predicated region
        $region25: #{tpu_custom_call.1} parent=15 // pred_check
          %p270 = pneg %p114
        $region26: #{tpu_custom_call.1} parent=15 // pred_check_branch
          %272 = sbr.rel (%p270) target = $region28
        $region27: #{tpu_custom_call.1} parent=15 // pred_region
          %s273 = sand.u32 %s24, 1
          %s274 = scalar_lea.sflag [#allocation6], %s273
          %s275 = sand.u32 %s104, 1
          %s276 = smul.addr %s275, 16
          %s277 = scalar_lea.vmem [#allocation7], %s276
          %s278 = smul.u32 4, %s32
          %s280 = ssub.s32 256, 256
          %281 = vsyncadd %s274, %s280
          %s282 = smul.addr %s31, 4
          %s283 = sadd.s32 %s278, %s282
          %s284 = smul.addr %s283, 64
          %s285 = scalar_lea.hbm %s2, %s284
          %s286 = sshll.u32 %s277, 4
          %s287 = int_to_ptr.vmem [resolvable:$true] %s286
          %292 = dma.hbm_to_vmem [thread:$0]  %s285, 256, %s287, %s274, 64, 64, 4
        $region28: #{tpu_custom_call.1} parent=15 // pred_fallthru
          _
      $region16: #{tpu_custom_call.1} parent=5 // pred_fallthru
        _
      %p293 = scmp.le.s32.totalorder 1, %s24
      %p294 = scmp.lt.s32.totalorder %s24, 3
      %p295 = pnand %p293, %p294
      %p296 = pneg %p295
      // Predicated region
      $region29: #{tpu_custom_call.1} parent=5 // pred_check
        _
      $region30: #{tpu_custom_call.1} parent=5 // pred_check_branch
        %298 = sbr.rel (%p295) target = $region32
      $region31: #{tpu_custom_call.1} parent=5 // pred_region
        %s299 = ssub.s32 %s24, 1
        %s300 = sand.u32 %s51, 1
        %s301 = scalar_lea.sflag [#allocation3], %s300
        %s302 = sand.u32 %s51, 1
        %s303 = smul.addr %s302, 64
        %s304 = scalar_lea.vmem [#allocation2], %s303
        // Predicated region
        $region33: #{tpu_custom_call.1} parent=31 // pred_check
          %p305 = pneg %p64
        $region34: #{tpu_custom_call.1} parent=31 // pred_check_branch
          %307 = sbr.rel (%p305) target = $region36
        $region35: #{tpu_custom_call.1} parent=31 // pred_region
          %308 = dma.done %s301, 1024
        $region36: #{tpu_custom_call.1} parent=31 // pred_fallthru
          _
        %s309 = sand.u32 %s29, 1
        %s310 = scalar_lea.sflag [#allocation6], %s309
        %s311 = sand.u32 %s79, 1
        %s312 = smul.addr %s311, 32
        %s313 = scalar_lea.vmem [#allocation5], %s312
        // Predicated region
        $region37: #{tpu_custom_call.1} parent=31 // pred_check
          %p314 = pneg %p92
        $region38: #{tpu_custom_call.1} parent=31 // pred_check_branch
          %316 = sbr.rel (%p314) target = $region40
        $region39: #{tpu_custom_call.1} parent=31 // pred_region
          %317 = dma.done %s310, 512
        $region40: #{tpu_custom_call.1} parent=31 // pred_fallthru
          _
        %s318 = sand.u32 %s29, 1
        %s319 = scalar_lea.sflag [#allocation6], %s318
        %s320 = sand.u32 %s107, 1
        %s321 = smul.addr %s320, 16
        %s322 = scalar_lea.vmem [#allocation7], %s321
        // Predicated region
        $region41: #{tpu_custom_call.1} parent=31 // pred_check
          %p323 = pneg %p120
        $region42: #{tpu_custom_call.1} parent=31 // pred_check_branch
          %325 = sbr.rel (%p323) target = $region44
        $region43: #{tpu_custom_call.1} parent=31 // pred_region
          %326 = dma.done %s319, 256
        $region44: #{tpu_custom_call.1} parent=31 // pred_fallthru
          _
        %s327 = sand.u32 %s51, 1
        %s328 = scalar_lea.sflag [#allocation3], %s327
        %s329 = sand.u32 %s51, 1
        %s330 = smul.addr %s329, 64
        %s331 = scalar_lea.vmem [#allocation2], %s330
        %p332 = pneg %p64
        %p333 = pneg %p61
        %s334 = sand.u32 %s29, 1
        %s335 = scalar_lea.sflag [#allocation6], %s334
        %s336 = sand.u32 %s79, 1
        %s337 = smul.addr %s336, 32
        %s338 = scalar_lea.vmem [#allocation5], %s337
        %p339 = pneg %p92
        %p340 = pneg %p89
        %s341 = sand.u32 %s29, 1
        %s342 = scalar_lea.sflag [#allocation6], %s341
        %s343 = sand.u32 %s107, 1
        %s344 = smul.addr %s343, 16
        %s345 = scalar_lea.vmem [#allocation7], %s344
        %p346 = pneg %p120
        %p347 = pneg %p117
        %p348 = pneg %p148
        %p349 = pneg %p145
        %s350 = sand.u32 %s135, 1
        %s351 = scalar_lea.sflag [#allocation4], %s350
        %s352 = sand.u32 %s135, 1
        %s353 = smul.addr %s352, 64
        %s354 = scalar_lea.vmem [#allocation8], %s353
        %p355 = pneg %p176
        %p356 = pneg %p173
        %s357 = sand.u32 %s29, 1
        %s358 = scalar_lea.sflag [#allocation10], %s357
        %s359 = sand.u32 %s163, 1
        %s360 = smul.addr %s359, 32
        %s361 = scalar_lea.vmem [#allocation9], %s360
        %p362 = pneg %p204
        %p363 = pneg %p201
        %s364 = sand.u32 %s29, 1
        %s365 = scalar_lea.sflag [#allocation10], %s364
        %s366 = sand.u32 %s191, 1
        %s367 = smul.addr %s366, 16
        %s368 = scalar_lea.vmem [#allocation11], %s367
        %s369 = smul.u32 4, %s34
        %s370 = smul.u32 4, %s34
        %s371 = smul.u32 4, %s34
        %s372 = smul.u32 4, %s34
        %s373 = smul.u32 4, %s34
        %s374 = smul.u32 4, %s34
        %v375 = vld [vmem:[%s304] sm:$0xff]
        %v376 = vld [vmem:[%s304 + $0x8] sm:$0xff]
        %v377 = vld [vmem:[%s304 + $0x10] sm:$0xff]
        %v378 = vld [vmem:[%s304 + $0x18] sm:$0xff]
        %v379 = vld [vmem:[%s304 + $0x20] sm:$0xff]
        %v380 = vld [vmem:[%s304 + $0x28] sm:$0xff]
        %v381 = vld [vmem:[%s304 + $0x30] sm:$0xff]
        %v382 = vld [vmem:[%s304 + $0x38] sm:$0xff]
        %vm383 = vcmask 130048
        %384 = vst.msk [vmem:[%s354] sm:$0xff] %vm383, %v375
        %385 = vst.msk [vmem:[%s354 + $0x8] sm:$0xff] %vm383, %v376
        %386 = vst.msk [vmem:[%s354 + $0x10] sm:$0xff] %vm383, %v377
        %387 = vst.msk [vmem:[%s354 + $0x18] sm:$0xff] %vm383, %v378
        %388 = vst.msk [vmem:[%s354 + $0x20] sm:$0xff] %vm383, %v379
        %389 = vst.msk [vmem:[%s354 + $0x28] sm:$0xff] %vm383, %v380
        %390 = vst.msk [vmem:[%s354 + $0x30] sm:$0xff] %vm383, %v381
        %391 = vst.msk [vmem:[%s354 + $0x38] sm:$0xff] %vm383, %v382
        %v392 = vld [vmem:[%s313] sm:$0xff]
        %v393 = vld [vmem:[%s313 + $0x8] sm:$0xff]
        %v394 = vld [vmem:[%s313 + $0x10] sm:$0xff]
        %v395 = vld [vmem:[%s313 + $0x18] sm:$0xff]
        %vm396 = vcmask 64512
        %397 = vst.msk [vmem:[%s361] sm:$0xff] %vm396, %v392
        %398 = vst.msk [vmem:[%s361 + $0x8] sm:$0xff] %vm396, %v393
        %399 = vst.msk [vmem:[%s361 + $0x10] sm:$0xff] %vm396, %v394
        %400 = vst.msk [vmem:[%s361 + $0x18] sm:$0xff] %vm396, %v395
        %v401 = vld [vmem:[%s322] sm:$0xf]
        %v402 = vld [vmem:[%s322 + $0x4] sm:$0xf]
        %v403 = vld [vmem:[%s322 + $0x8] sm:$0xf]
        %v404 = vld [vmem:[%s322 + $0xc] sm:$0xf]
        %vm405 = vcmask 27648
        %406 = vst.msk [vmem:[%s368] sm:$0xf] %vm405, %v401
        %407 = vst.msk [vmem:[%s368 + $0x4] sm:$0xf] %vm405, %v402
        %408 = vst.msk [vmem:[%s368 + $0x8] sm:$0xf] %vm405, %v403
        %409 = vst.msk [vmem:[%s368 + $0xc] sm:$0xf] %vm405, %v404
        %s410 = sand.u32 %s135, 1
        %s411 = scalar_lea.sflag [#allocation4], %s410
        %s412 = sand.u32 %s135, 1
        %s413 = smul.addr %s412, 64
        %s414 = scalar_lea.vmem [#allocation8], %s413
        %s415 = sand.u32 %s29, 1
        %s416 = scalar_lea.sflag [#allocation10], %s415
        %s417 = sand.u32 %s163, 1
        %s418 = smul.addr %s417, 32
        %s419 = scalar_lea.vmem [#allocation9], %s418
        %s420 = sand.u32 %s29, 1
        %s421 = scalar_lea.sflag [#allocation10], %s420
        %s422 = sand.u32 %s191, 1
        %s423 = smul.addr %s422, 16
        %s424 = scalar_lea.vmem [#allocation11], %s423
        // Predicated region
        $region45: #{tpu_custom_call.1} parent=31 // pred_check
          %p425 = pneg %p145
        $region46: #{tpu_custom_call.1} parent=31 // pred_check_branch
          %427 = sbr.rel (%p425) target = $region48
        $region47: #{tpu_custom_call.1} parent=31 // pred_region
          %s428 = smul.u32 4, %s34
          %s430 = ssub.s32 1024, 1024
          %431 = vsyncadd %s411, %s430
          %s432 = smul.addr %s428, 2
          %s433 = smul.addr %s33, 8
          %s434 = sadd.s32 %s432, %s433
          %s435 = smul.addr %s434, 128
          %s436 = scalar_lea.hbm %s3, %s435
          %s437 = sshll.u32 %s414, 4
          %s438 = int_to_ptr.vmem [resolvable:$true] %s437
          %443 = dma.vmem_to_hbm [thread:$0]  %s438, 1024, %s436, %s411, 128, 128, 8
        $region48: #{tpu_custom_call.1} parent=31 // pred_fallthru
          _
        // Predicated region
        $region49: #{tpu_custom_call.1} parent=31 // pred_check
          %p444 = pneg %p173
        $region50: #{tpu_custom_call.1} parent=31 // pred_check_branch
          %446 = sbr.rel (%p444) target = $region52
        $region51: #{tpu_custom_call.1} parent=31 // pred_region
          %s447 = smul.u32 4, %s34
          %s449 = ssub.s32 512, 512
          %450 = vsyncadd %s416, %s449
          %s451 = smul.addr %s33, 4
          %s452 = sadd.s32 %s447, %s451
          %s453 = smul.addr %s452, 128
          %s454 = scalar_lea.hbm %s4, %s453
          %s455 = sshll.u32 %s419, 4
          %s456 = int_to_ptr.vmem [resolvable:$true] %s455
          %461 = dma.vmem_to_hbm [thread:$0]  %s456, 512, %s454, %s416, 128, 128, 8
        $region52: #{tpu_custom_call.1} parent=31 // pred_fallthru
          _
        // Predicated region
        $region53: #{tpu_custom_call.1} parent=31 // pred_check
          %p462 = pneg %p201
        $region54: #{tpu_custom_call.1} parent=31 // pred_check_branch
          %464 = sbr.rel (%p462) target = $region56
        $region55: #{tpu_custom_call.1} parent=31 // pred_region
          %s465 = smul.u32 4, %s34
          %s467 = ssub.s32 256, 256
          %468 = vsyncadd %s421, %s467
          %s469 = smul.addr %s33, 4
          %s470 = sadd.s32 %s465, %s469
          %s471 = smul.addr %s470, 64
          %s472 = scalar_lea.hbm %s5, %s471
          %s473 = sshll.u32 %s424, 4
          %s474 = int_to_ptr.vmem [resolvable:$true] %s473
          %479 = dma.vmem_to_hbm [thread:$0]  %s474, 256, %s472, %s421, 64, 64, 4
        $region56: #{tpu_custom_call.1} parent=31 // pred_fallthru
          _
      $region32: #{tpu_custom_call.1} parent=5 // pred_fallthru
        _
      %p480 = scmp.le.s32.totalorder 2, %s24
      // Predicated region
      $region57: #{tpu_custom_call.1} parent=5 // pred_check
        %p481 = pneg %p480
      $region58: #{tpu_custom_call.1} parent=5 // pred_check_branch
        %483 = sbr.rel (%p481) target = $region60
      $region59: #{tpu_custom_call.1} parent=5 // pred_region
        %s484 = ssub.s32 %s24, 2
        // Predicated region
        $region61: #{tpu_custom_call.1} parent=59 // pred_check
          %p485 = pneg %p151
        $region62: #{tpu_custom_call.1} parent=59 // pred_check_branch
          %487 = sbr.rel (%p485) target = $region64
        $region63: #{tpu_custom_call.1} parent=59 // pred_region
          %s488 = sand.u32 %s136, 1
          %s489 = scalar_lea.sflag [#allocation4], %s488
          %s490 = sand.u32 %s136, 1
          %s491 = smul.addr %s490, 64
          %s492 = scalar_lea.vmem [#allocation8], %s491
          %493 = dma.done %s489, 1024
        $region64: #{tpu_custom_call.1} parent=59 // pred_fallthru
          _
        // Predicated region
        $region65: #{tpu_custom_call.1} parent=59 // pred_check
          %p494 = pneg %p179
        $region66: #{tpu_custom_call.1} parent=59 // pred_check_branch
          %496 = sbr.rel (%p494) target = $region68
        $region67: #{tpu_custom_call.1} parent=59 // pred_region
          %s497 = sand.u32 %s30, 1
          %s498 = scalar_lea.sflag [#allocation10], %s497
          %s499 = sand.u32 %s164, 1
          %s500 = smul.addr %s499, 32
          %s501 = scalar_lea.vmem [#allocation9], %s500
          %502 = dma.done %s498, 512
        $region68: #{tpu_custom_call.1} parent=59 // pred_fallthru
          _
        // Predicated region
        $region69: #{tpu_custom_call.1} parent=59 // pred_check
          %p503 = pneg %p207
        $region70: #{tpu_custom_call.1} parent=59 // pred_check_branch
          %505 = sbr.rel (%p503) target = $region72
        $region71: #{tpu_custom_call.1} parent=59 // pred_region
          %s506 = sand.u32 %s30, 1
          %s507 = scalar_lea.sflag [#allocation10], %s506
          %s508 = sand.u32 %s192, 1
          %s509 = smul.addr %s508, 16
          %s510 = scalar_lea.vmem [#allocation11], %s509
          %511 = dma.done %s507, 256
        $region72: #{tpu_custom_call.1} parent=59 // pred_fallthru
          _
      $region60: #{tpu_custom_call.1} parent=5 // pred_fallthru
        _
    $region6: #{tpu_custom_call.1} parent=1 // loop_footer
      %s28 = sadd.s32 1, %s24
    $region7: #{tpu_custom_call.1} parent=1 // loop_footer_branch
      %23 = sbr.rel target = $region3
    $region8: #{tpu_custom_call.1} parent=1 // loop_exit
      _
    %512 = vsyncpa [#allocation3], 1
    %s513 = scalar_lea.sflag [#allocation3], 1
    %514 = vsyncpa %s513, 1
    %515 = vsyncpa [#allocation6], 1
    %s516 = scalar_lea.sflag [#allocation6], 1
    %517 = vsyncpa %s516, 1
    %518 = vsyncpa [#allocation4], 1
    %s519 = scalar_lea.sflag [#allocation4], 1
    %520 = vsyncpa %s519, 1
    %521 = vsyncpa [#allocation10], 1
    %s522 = scalar_lea.sflag [#allocation10], 1
    %523 = vsyncpa %s522, 1

</llo_original>
